<compile_context>
chip_gen: v6e
topology: v6e:2x2x1
jax: 0.10.0
libtpu: 0.0.40
codegen_flags: <defaults>
</compile_context>

<pallas_src>
import functools

import jax
import jax.numpy as jnp
from jax.experimental import pallas as pl
from jax.experimental.pallas import tpu as pltpu


def _l1_kernel(x_ref, a_ref, y_ref, o_ref, yhat_acc, l1_acc):
    """Grid = (chunk c [parallel], M-tile j, N-tile k [reduction]).

    x_ref:    [B, TN]    tile of the flattened image batch
    a_ref:    [TN, TM]   tile of the sensing matrix
    y_ref:    [B, TM]    tile of the measurements (constant over k)
    o_ref:    [1, 1, B]  per-chunk partial L1 (resident across j, k)
    yhat_acc: [B, TM]    f32 matmul accumulator (over k)
    l1_acc:   [B, TM]    f32 elementwise |r| accumulator (over j)
    """
    j = pl.program_id(1)
    k = pl.program_id(2)
    nj = pl.num_programs(1)
    nk = pl.num_programs(2)

    # Zero the per-chunk |r| accumulator on the very first step of this chunk.
    @pl.when(jnp.logical_and(j == 0, k == 0))
    def _():
        l1_acc[...] = jnp.zeros_like(l1_acc)

    # Zero the matmul accumulator at the start of every N-reduction.
    @pl.when(k == 0)
    def _():
        yhat_acc[...] = jnp.zeros_like(yhat_acc)

    # Forward-model partial: yhat_tile += x_tile @ A_tile   (MXU, f32 acc).
    yhat_acc[...] += jnp.dot(
        x_ref[...], a_ref[...], preferred_element_type=jnp.float32
    )

    # N-reduction done for this measurement tile: residual, abs, accumulate
    # elementwise (VPU only; no per-step cross-lane reduce or masked store).
    @pl.when(k == nk - 1)
    def _():
        r = yhat_acc[...] - y_ref[...].astype(jnp.float32)
        l1_acc[...] += jnp.abs(r)

    # Last step of this chunk: single cross-lane reduce + output write.
    @pl.when(jnp.logical_and(j == nj - 1, k == nk - 1))
    def _():
        o_ref[...] = jnp.sum(l1_acc[...], axis=1)[None, None, :]


def _pick_tile(dim, req, quantum=128):
    """Largest t <= min(req, dim) with t % quantum == 0 and dim % t == 0.

    Falls back to the full extent (always a legal block) if none exists.
    """
    t = min(req, dim)
    t -= t % quantum
    while t >= quantum:
        if dim % t == 0:
            return t
        t -= quantum
    return dim


@functools.partial(jax.jit, static_argnames=("tm", "tn", "n_chunks"))
def l1_fidelity(x, y, a, *, tm=1024, tn=1024, n_chunks=2):
    """Computes ||flatten(x) @ a - y||_1 per batch element.

    Args:
      x: [B, C, Hh, W] float32 image batch (NCHW).
      y: [B, M] float32 measurements.
      a: [N, M] float32 sensing matrix, N = C*Hh*W.
      tm: requested measurement-axis tile size (auto-clamped to a divisor).
      tn: requested pixel-axis tile size (auto-clamped to a divisor).
      n_chunks: number of independent M-chunks (parallel axis; uses both
        TensorCores on v7x, harmless elsewhere).

    Returns:
      [B] float32, L1 fidelity per batch element.
    """
    b = x.shape[0]
    n = x.shape[1] * x.shape[2] * x.shape[3]
    m = y.shape[1]
    assert a.shape == (n, m), (a.shape, (n, m))

    # Megacore split over M; fall back to a single chunk if M doesn't divide
    # into 128-aligned chunks.
    if m % n_chunks != 0 or (m // n_chunks) % 128 != 0:
        n_chunks = 1
    m_per_chunk = m // n_chunks

    tm = _pick_tile(m_per_chunk, tm, quantum=128)
    tn = _pick_tile(n, tn, quantum=128)
    tiles_per_chunk = m_per_chunk // tm
    n_tiles_k = n // tn

    x_flat = x.reshape(b, n)  # glue: row-major flatten of C, Hh, W

    # VMEM budget: double-buffered inputs + resident output + scratch.
    vmem_bytes = 4 * (
        2 * (b * tn + tn * tm + b * tm)  # double-buffered x, A, y tiles
        + 2 * b * tm                      # yhat + |r| accumulators
        + b                               # resident output row
    )
    vmem_limit = int(min(48 * 1024 * 1024, max(2 * vmem_bytes, 16 * 1024 * 1024)))

    partial = pl.pallas_call(
        _l1_kernel,
        out_shape=jax.ShapeDtypeStruct((n_chunks, 1, b), jnp.float32),
        grid_spec=pltpu.PrefetchScalarGridSpec(
            num_scalar_prefetch=0,
            grid=(n_chunks, tiles_per_chunk, n_tiles_k),
            in_specs=[
                # x tile along N (re-fetched per j; traffic is negligible).
                pl.BlockSpec((b, tn), lambda c, j, k: (0, k)),
                # A tile: streamed exactly once (dominant HBM traffic).
                pl.BlockSpec(
                    (tn, tm), lambda c, j, k: (k, c * tiles_per_chunk + j)
                ),
                # y tile for this measurement block (constant over k).
                pl.BlockSpec(
                    (b, tm), lambda c, j, k: (0, c * tiles_per_chunk + j)
                ),
            ],
            # One resident partial-output row per parallel chunk.
            out_specs=pl.BlockSpec((1, 1, b), lambda c, j, k: (c, 0, 0)),
            scratch_shapes=[
                pltpu.VMEM((b, tm), jnp.float32),  # yhat accumulator
                pltpu.VMEM((b, tm), jnp.float32),  # |r| accumulator
            ],
        ),
        compiler_params=pltpu.CompilerParams(
            dimension_semantics=("parallel", "arbitrary", "arbitrary"),
            vmem_limit_bytes=vmem_limit,
        ),
        cost_estimate=pl.CostEstimate(
            flops=2 * b * n * m,
            transcendentals=0,
            bytes_accessed=4 * (n * m + b * n + 2 * b * m),
        ),
    )(x_flat, a, y)

    # Sum per-chunk partials -> [B].
    return jnp.sum(partial[:, 0, :], axis=0)


# TODO(synk): the module's `grad` method (autograd of the L1 norm) is not a
# forward pass and is not translated here.

if __name__ == "__main__":
    key = jax.random.PRNGKey(0)
    kx, ky, ka = jax.random.split(key, 3)

    B, C, Hh, W = 2, 4, 16, 16       # NCHW image
    N = C * Hh * W                   # 1024
    M = 512                          # number of measurements

    x = jax.random.normal(kx, (B, C, Hh, W), dtype=jnp.float32)
    y = jax.random.normal(ky, (B, M), dtype=jnp.float32)
    # Deterministic sensing operator H(x) = flatten(x) @ A
    A = jax.random.normal(ka, (N, M), dtype=jnp.float32) / jnp.sqrt(N)

    out = l1_fidelity(x, y, A)
    out = jax.block_until_ready(out)

    # Silent correctness check against a pure-JAX reference of the PyTorch op:
    # r = H(x) - y; r = r.reshape(B, -1); norm(r, p=1, dim=1)
    ref = jnp.sum(jnp.abs(x.reshape(B, -1) @ A - y), axis=1)
    assert out.shape == (B,)
    assert jnp.allclose(out, ref, rtol=1e-5, atol=1e-4), (out, ref)

    print("KERNEL_OK")
</pallas_src>

<mosaic_0001>
module attributes {stable_mosaic.version = 11 : i64} {
  func.func @_l1_kernel(%arg0: i32, %arg1: i32, %arg2: i32, %arg3: memref<2x1024xf32, #tpu.memory_space<vmem>>, %arg4: memref<1024x256xf32, #tpu.memory_space<vmem>>, %arg5: memref<2x256xf32, #tpu.memory_space<vmem>>, %arg6: memref<1x1x2xf32, #tpu.memory_space<vmem>>, %arg7: memref<2x256xf32, #tpu.memory_space<vmem>>, %arg8: memref<2x256xf32, #tpu.memory_space<vmem>>) attributes {dimension_semantics = [#tpu.dimension_semantics<parallel>, #tpu.dimension_semantics<arbitrary>, #tpu.dimension_semantics<arbitrary>], iteration_bounds = array<i64: 2, 1, 1>, scalar_prefetch = 0 : i64, scratch_operands = 2 : i64, tpu.core_type = #tpu.core_type<tc>, window_params = [{transform_indices = @transform_0, window_bounds = array<i64: 2, 1024>}, {transform_indices = @transform_1, window_bounds = array<i64: 1024, 256>}, {transform_indices = @transform_2, window_bounds = array<i64: 2, 256>}, {transform_indices = @transform_3, window_bounds = array<i64: 1, 1, 2>}]} {
    %c0_i32 = arith.constant 0 : i32
    %0 = arith.cmpi eq, %arg1, %c0_i32 : i32
    %c0_i32_0 = arith.constant 0 : i32
    %1 = arith.cmpi eq, %arg2, %c0_i32_0 : i32
    %2 = arith.andi %0, %1 : i1
    %3 = arith.extui %2 : i1 to i32
    %c0_i32_1 = arith.constant 0 : i32
    %4 = arith.cmpi ne, %3, %c0_i32_1 : i32
    scf.if %4 {
      %cst_16 = arith.constant 0.000000e+00 : f32
      %22 = vector.broadcast %cst_16 : f32 to vector<2x256xf32>
      %c0_17 = arith.constant 0 : index
      %c0_18 = arith.constant 0 : index
      %23 = vector.load %arg8[%c0_17, %c0_18] : memref<2x256xf32, #tpu.memory_space<vmem>>, vector<2x256xf32>
      tpu.vector_store %arg8[%c0_17, %c0_18], %22 {strides = array<i32>} : memref<2x256xf32, #tpu.memory_space<vmem>>, vector<2x256xf32>,
    } else {
    }
    %c0_i32_2 = arith.constant 0 : i32
    %5 = arith.cmpi eq, %arg2, %c0_i32_2 : i32
    %6 = arith.extui %5 : i1 to i32
    %c0_i32_3 = arith.constant 0 : i32
    %7 = arith.cmpi ne, %6, %c0_i32_3 : i32
    scf.if %7 {
      %cst_16 = arith.constant 0.000000e+00 : f32
      %22 = vector.broadcast %cst_16 : f32 to vector<2x256xf32>
      %c0_17 = arith.constant 0 : index
      %c0_18 = arith.constant 0 : index
      %23 = vector.load %arg7[%c0_17, %c0_18] : memref<2x256xf32, #tpu.memory_space<vmem>>, vector<2x256xf32>
      tpu.vector_store %arg7[%c0_17, %c0_18], %22 {strides = array<i32>} : memref<2x256xf32, #tpu.memory_space<vmem>>, vector<2x256xf32>,
    } else {
    }
    %c0 = arith.constant 0 : index
    %c0_4 = arith.constant 0 : index
    %8 = vector.load %arg7[%c0, %c0_4] : memref<2x256xf32, #tpu.memory_space<vmem>>, vector<2x256xf32>
    %c0_5 = arith.constant 0 : index
    %c0_6 = arith.constant 0 : index
    %9 = vector.load %arg3[%c0_5, %c0_6] : memref<2x1024xf32, #tpu.memory_space<vmem>>, vector<2x1024xf32>
    %c0_7 = arith.constant 0 : index
    %c0_8 = arith.constant 0 : index
    %10 = vector.load %arg4[%c0_7, %c0_8] : memref<1024x256xf32, #tpu.memory_space<vmem>>, vector<1024x256xf32>
    %cst = arith.constant dense<0.000000e+00> : vector<2x256xf32>
    %11 = tpu.matmul %9, %10, %cst {dimension_numbers = #tpu.dot_dimension_numbers<[1], [0], [0], [1], [0, 0, 1, 1], [], []>} : vector<2x1024xf32>, vector<1024x256xf32>, vector<2x256xf32> -> vector<2x256xf32>
    %12 = arith.addf %8, %11 : vector<2x256xf32>
    %c0_9 = arith.constant 0 : index
    %c0_10 = arith.constant 0 : index
    %13 = vector.load %arg7[%c0_9, %c0_10] : memref<2x256xf32, #tpu.memory_space<vmem>>, vector<2x256xf32>
    tpu.vector_store %arg7[%c0_9, %c0_10], %12 {strides = array<i32>} : memref<2x256xf32, #tpu.memory_space<vmem>>, vector<2x256xf32>,
    %c0_i32_11 = arith.constant 0 : i32
    %14 = arith.cmpi eq, %arg2, %c0_i32_11 : i32
    %15 = arith.extui %14 : i1 to i32
    %c0_i32_12 = arith.constant 0 : i32
    %16 = arith.cmpi ne, %15, %c0_i32_12 : i32
    scf.if %16 {
      %c0_16 = arith.constant 0 : index
      %c0_17 = arith.constant 0 : index
      %22 = vector.load %arg7[%c0_16, %c0_17] : memref<2x256xf32, #tpu.memory_space<vmem>>, vector<2x256xf32>
      %c0_18 = arith.constant 0 : index
      %c0_19 = arith.constant 0 : index
      %23 = vector.load %arg5[%c0_18, %c0_19] : memref<2x256xf32, #tpu.memory_space<vmem>>, vector<2x256xf32>
      %24 = arith.subf %22, %23 : vector<2x256xf32>
      %c0_20 = arith.constant 0 : index
      %c0_21 = arith.constant 0 : index
      %25 = vector.load %arg8[%c0_20, %c0_21] : memref<2x256xf32, #tpu.memory_space<vmem>>, vector<2x256xf32>
      %26 = math.absf %24 : vector<2x256xf32>
      %27 = arith.addf %25, %26 : vector<2x256xf32>
      %c0_22 = arith.constant 0 : index
      %c0_23 = arith.constant 0 : index
      %28 = vector.load %arg8[%c0_22, %c0_23] : memref<2x256xf32, #tpu.memory_space<vmem>>, vector<2x256xf32>
      tpu.vector_store %arg8[%c0_22, %c0_23], %27 {strides = array<i32>} : memref<2x256xf32, #tpu.memory_space<vmem>>, vector<2x256xf32>,
    } else {
    }
    %c0_i32_13 = arith.constant 0 : i32
    %17 = arith.cmpi eq, %arg1, %c0_i32_13 : i32
    %c0_i32_14 = arith.constant 0 : i32
    %18 = arith.cmpi eq, %arg2, %c0_i32_14 : i32
    %19 = arith.andi %17, %18 : i1
    %20 = arith.extui %19 : i1 to i32
    %c0_i32_15 = arith.constant 0 : i32
    %21 = arith.cmpi ne, %20, %c0_i32_15 : i32
    scf.if %21 {
      %c0_16 = arith.constant 0 : index
      %c0_17 = arith.constant 0 : index
      %22 = vector.load %arg8[%c0_16, %c0_17] : memref<2x256xf32, #tpu.memory_space<vmem>>, vector<2x256xf32>
      %cst_18 = arith.constant dense<0.000000e+00> : vector<2xf32>
      %23 = vector.multi_reduction <add>, %22, %cst_18 [1] : vector<2x256xf32> to vector<2xf32>
      %24 = vector.shape_cast %23 : vector<2xf32> to vector<1x1x2xf32>
      %c0_19 = arith.constant 0 : index
      %c0_20 = arith.constant 0 : index
      %c0_21 = arith.constant 0 : index
      %25 = vector.load %arg6[%c0_19, %c0_20, %c0_21] : memref<1x1x2xf32, #tpu.memory_space<vmem>>, vector<1x1x2xf32>
      tpu.vector_store %arg6[%c0_19, %c0_20, %c0_21], %24 {strides = array<i32>} : memref<1x1x2xf32, #tpu.memory_space<vmem>>, vector<1x1x2xf32>,
    } else {
    }
    return
  }
  func.func @transform_0(%arg0: i32, %arg1: i32, %arg2: i32) -> (i32, i32) {
    %c0_i32 = arith.constant 0 : i32
    %c0_i32_0 = arith.constant 0 : i32
    return %c0_i32, %arg2 : i32, i32
  }
  func.func @transform_1(%arg0: i32, %arg1: i32, %arg2: i32) -> (i32, i32) {
    %c1_i32 = arith.constant 1 : i32
    %0 = arith.muli %arg0, %c1_i32 : i32
    %1 = arith.addi %0, %arg1 : i32
    %c0_i32 = arith.constant 0 : i32
    return %arg2, %1 : i32, i32
  }
  func.func @transform_2(%arg0: i32, %arg1: i32, %arg2: i32) -> (i32, i32) {
    %c1_i32 = arith.constant 1 : i32
    %0 = arith.muli %arg0, %c1_i32 : i32
    %1 = arith.addi %0, %arg1 : i32
    %c0_i32 = arith.constant 0 : i32
    %c0_i32_0 = arith.constant 0 : i32
    return %c0_i32, %1 : i32, i32
  }
  func.func @transform_3(%arg0: i32, %arg1: i32, %arg2: i32) -> (i32, i32, i32) {
    %c0_i32 = arith.constant 0 : i32
    %c0_i32_0 = arith.constant 0 : i32
    %c0_i32_1 = arith.constant 0 : i32
    return %arg0, %c0_i32, %c0_i32_0 : i32, i32, i32
  }
}

</mosaic_0001>

<llo_original>
// kernel: l1_fidelity.1
$region0: #{l1_fidelity.1}
  #allocation0 [shape = 'u32[]', space=smem, size = 0x4, offset = 0x4, fixed_abs, tag = 'smem constant byte address 0x4 - core index']
  #allocation1 [shape = 'u32[144,128]{1,0:T(1,128)}', space=vmem, size = 0x12000, scoped, tag = 'internal scratch']
  #allocation2 [shape = 'f32[2,256]{1,0:T(2,128)}', space=vmem, size = 0x800, scoped, tag = 'scratch operand']
  #allocation3 [shape = 'f32[2,256]{1,0:T(2,128)}', space=vmem, size = 0x800, scoped, tag = 'scratch operand']
  %s0 = inlined_call_operand.vmem [shape: f32[2,1024], index: 0, kind: input, shape index: {}]
  %s1 = inlined_call_operand.hbm [shape: f32[1024,512], index: 1, kind: input, shape index: {}]
  %s2 = inlined_call_operand.hbm [shape: f32[2,512], index: 2, kind: input, shape index: {}]
  %s3 = inlined_call_operand.vmem [shape: f32[2,1,2], index: 3, kind: output, shape index: {}]
  %s4 = sld [smem:[#allocation0]]
  $region69: #{l1_fidelity.1} parent=0
    _
  %s6 = ssub.s32 1, %s4
  %s7 = scalar_select 0, %s6, %s4
  $region1: #{l1_fidelity.1} parent=0
    #allocation4 [shape = 'u8[2097152]{0}', space=vmem, size = 0x200000, scoped, tag = 'input window, operand 1']
    #allocation5 [shape = 's32[2]{0}', space=sflag, size = 0x8, scoped, tag = 'scoped memory for l1_fidelity.1']
    #allocation6 [shape = 'u8[4096]{0}', space=vmem, size = 0x1000, scoped, tag = 'input window, operand 2']
    #allocation7 [shape = 's32[2]{0}', space=sflag, size = 0x8, scoped, tag = 'scoped memory for l1_fidelity.1']
    %8 = vsyncpa [#allocation5], 0
    %s9 = scalar_lea.sflag [#allocation5], 1
    %10 = vsyncpa %s9, 0
    %11 = vsyncpa [#allocation7], 0
    %s12 = scalar_lea.sflag [#allocation7], 1
    %13 = vsyncpa %s12, 0
    loop: start=0, step=1, limit=4
    $region2: #{l1_fidelity.1} parent=1 // loop_pre_header
      _
    $region3: #{l1_fidelity.1} parent=1 // loop_header
      %s15 = sphi 0, %s19
      %p16 = scmp.ge.s32.totalorder %s15, 4
      %s22 = sphi 0, %s41
      %s23 = sphi 0, %s37
      %s24 = sphi 0, %s33
      %s25 = sphi 0, %s22
      %s26 = sphi 0, %s23
      %s27 = sphi 0, %s24
      %s28 = sphi 0, %s25
      %s29 = sphi 0, %s26
      %s30 = sphi 0, %s27
      %s44 = sphi 0, %s46
      %s47 = sphi 0, %s44
      %s48 = sphi 0, %s47
      %s64 = sphi 0, %s48
      %s74 = sphi 0, %s76
      %s77 = sphi 0, %s74
      %s78 = sphi 0, %s77
      %s94 = sphi 0, %s78
      %s102 = sphi 0, %s104
      %s105 = sphi 0, %s102
      %s106 = sphi 0, %s105
      %s122 = sphi 0, %s106
      %s128 = sphi 0, %s130
      %s131 = sphi 0, %s128
      %s132 = sphi 0, %s131
      %s148 = sphi 0, %s132
    $region4: #{l1_fidelity.1} parent=1 // loop_header_branch
      %18 = sbr.rel (%p16) target = $region8
    $region5: #{l1_fidelity.1} parent=1 // loop_body
      %s20 = ssub.s32 %s15, 1
      %s21 = ssub.s32 %s15, 2
      %s31 = sadd.s32 1, %s24
      %p32 = scmp.ge.s32.totalorder %s31, 1
      %s33 = scalar_select %p32, 0, %s31
      %s34 = sadd.s32 1, %s23
      %s35 = scalar_select %p32, %s34, %s23
      %p36 = scmp.ge.s32.totalorder %s35, 1
      %s37 = scalar_select %p36, 0, %s35
      %s38 = sadd.s32 1, %s22
      %s39 = scalar_select %p36, %s38, %s22
      %p40 = scmp.ge.s32.totalorder %s39, 2
      %s41 = scalar_select %p40, 0, %s39
      %s42 = ssub.s32 %s24, %s33
      %p43 = scmp.eq.s32.totalorder %s42, 0
      %s45 = sadd.s32 %s44, 1
      %s46 = scalar_select %p43, %s44, %s45
      %p49 = pneg %p43
      %p50 = scmp.eq.s32.totalorder %s15, 1
      %p51 = por %p49, %p50
      %p52 = scmp.ne.s32.totalorder %s44, %s47
      %p53 = scmp.eq.s32.totalorder %s15, 0
      %p54 = por %p52, %p53
      %p55 = scmp.ne.s32.totalorder %s44, %s47
      %p56 = scmp.eq.s32.totalorder %s20, 1
      %p57 = por %p55, %p56
      %p58 = scmp.ne.s32.totalorder %s47, %s48
      %p59 = scmp.eq.s32.totalorder %s20, 0
      %p60 = por %p58, %p59
      %p61 = scmp.ne.s32.totalorder %s47, %s48
      %p62 = scmp.eq.s32.totalorder %s21, 1
      %p63 = por %p61, %p62
      %p65 = scmp.ne.s32.totalorder %s48, %s64
      %p66 = scmp.eq.s32.totalorder %s21, 0
      %p67 = por %p65, %p66
      %s68 = sadd.s32 %s22, %s23
      %s69 = sadd.s32 %s41, %s37
      %s70 = ssub.s32 %s24, %s33
      %s71 = ssub.s32 %s68, %s69
      %s72 = sor.u32 %s70, %s71
      %p73 = scmp.eq.s32.totalorder %s72, 0
      %s75 = sadd.s32 %s74, 1
      %s76 = scalar_select %p73, %s74, %s75
      %p79 = pneg %p73
      %p80 = scmp.eq.s32.totalorder %s15, 1
      %p81 = por %p79, %p80
      %p82 = scmp.ne.s32.totalorder %s74, %s77
      %p83 = scmp.eq.s32.totalorder %s15, 0
      %p84 = por %p82, %p83
      %p85 = scmp.ne.s32.totalorder %s74, %s77
      %p86 = scmp.eq.s32.totalorder %s20, 1
      %p87 = por %p85, %p86
      %p88 = scmp.ne.s32.totalorder %s77, %s78
      %p89 = scmp.eq.s32.totalorder %s20, 0
      %p90 = por %p88, %p89
      %p91 = scmp.ne.s32.totalorder %s77, %s78
      %p92 = scmp.eq.s32.totalorder %s21, 1
      %p93 = por %p91, %p92
      %p95 = scmp.ne.s32.totalorder %s78, %s94
      %p96 = scmp.eq.s32.totalorder %s21, 0
      %p97 = por %p95, %p96
      %s98 = sadd.s32 %s22, %s23
      %s99 = sadd.s32 %s41, %s37
      %s100 = ssub.s32 %s98, %s99
      %p101 = scmp.eq.s32.totalorder %s100, 0
      %s103 = sadd.s32 %s102, 1
      %s104 = scalar_select %p101, %s102, %s103
      %p107 = pneg %p101
      %p108 = scmp.eq.s32.totalorder %s15, 1
      %p109 = por %p107, %p108
      %p110 = scmp.ne.s32.totalorder %s102, %s105
      %p111 = scmp.eq.s32.totalorder %s15, 0
      %p112 = por %p110, %p111
      %p113 = scmp.ne.s32.totalorder %s102, %s105
      %p114 = scmp.eq.s32.totalorder %s20, 1
      %p115 = por %p113, %p114
      %p116 = scmp.ne.s32.totalorder %s105, %s106
      %p117 = scmp.eq.s32.totalorder %s20, 0
      %p118 = por %p116, %p117
      %p119 = scmp.ne.s32.totalorder %s105, %s106
      %p120 = scmp.eq.s32.totalorder %s21, 1
      %p121 = por %p119, %p120
      %p123 = scmp.ne.s32.totalorder %s106, %s122
      %p124 = scmp.eq.s32.totalorder %s21, 0
      %p125 = por %p123, %p124
      %s126 = ssub.s32 %s22, %s41
      %p127 = scmp.eq.s32.totalorder %s126, 0
      %s129 = sadd.s32 %s128, 1
      %s130 = scalar_select %p127, %s128, %s129
      %p133 = pneg %p127
      %p134 = scmp.eq.s32.totalorder %s15, 1
      %p135 = por %p133, %p134
      %p136 = scmp.ne.s32.totalorder %s128, %s131
      %p137 = scmp.eq.s32.totalorder %s15, 0
      %p138 = por %p136, %p137
      %p139 = scmp.ne.s32.totalorder %s128, %s131
      %p140 = scmp.eq.s32.totalorder %s20, 1
      %p141 = por %p139, %p140
      %p142 = scmp.ne.s32.totalorder %s131, %s132
      %p143 = scmp.eq.s32.totalorder %s20, 0
      %p144 = por %p142, %p143
      %p145 = scmp.ne.s32.totalorder %s131, %s132
      %p146 = scmp.eq.s32.totalorder %s21, 1
      %p147 = por %p145, %p146
      %p149 = scmp.ne.s32.totalorder %s132, %s148
      %p150 = scmp.eq.s32.totalorder %s21, 0
      %p151 = por %p149, %p150
      %p152 = scmp.le.s32.totalorder 1, %s15
      %p153 = scmp.lt.s32.totalorder %s15, 3
      %p154 = pnand %p152, %p153
      %p155 = pneg %p154
      // Predicated region
      $region9: #{l1_fidelity.1} parent=5 // pred_check
        _
      $region10: #{l1_fidelity.1} parent=5 // pred_check_branch
        %157 = sbr.rel (%p154) target = $region12
      $region11: #{l1_fidelity.1} parent=5 // pred_region
        %s158 = ssub.s32 %s15, 1
        // Predicated region
        $region13: #{l1_fidelity.1} parent=11 // pred_check
          %p159 = pneg %p60
        $region14: #{l1_fidelity.1} parent=11 // pred_check_branch
          %161 = sbr.rel (%p159) target = $region16
        $region15: #{l1_fidelity.1} parent=11 // pred_region
          %s162 = smul.u32 8, %s27
          %p163 = scmp.lt.s32.totalorder %s162, 7
          %s164 = scalar_select %p163, %s162, 7
          %s165 = smul.addr %s164, 2
          %s166 = scalar_lea.vmem %s0, %s165
          %s167 = smul.u32 8, %s27
        $region16: #{l1_fidelity.1} parent=11 // pred_fallthru
          _
      $region12: #{l1_fidelity.1} parent=5 // pred_fallthru
        _
      %p168 = scmp.lt.s32.totalorder %s15, 2
      // Predicated region
      $region17: #{l1_fidelity.1} parent=5 // pred_check
        %p169 = pneg %p168
      $region18: #{l1_fidelity.1} parent=5 // pred_check_branch
        %171 = sbr.rel (%p169) target = $region20
      $region19: #{l1_fidelity.1} parent=5 // pred_region
        // Predicated region
        $region21: #{l1_fidelity.1} parent=19 // pred_check
          %p172 = pneg %p84
        $region22: #{l1_fidelity.1} parent=19 // pred_check_branch
          %174 = sbr.rel (%p172) target = $region24
        $region23: #{l1_fidelity.1} parent=19 // pred_region
          %s175 = sand.u32 %s74, 1
          %s176 = scalar_lea.sflag [#allocation5], %s175
          %s177 = sand.u32 %s74, 1
          %s178 = smul.addr %s177, 2048
          %s179 = scalar_lea.vmem [#allocation4], %s178
          %s180 = sadd.s32 %s22, %s23
          %s181 = smul.u32 128, %s24
          %s182 = smul.u32 2, %s180
          %s184 = ssub.s32 32768, 32768
          %185 = vsyncadd %s176, %s184
          %s186 = smul.addr %s181, 4
          %s187 = sadd.s32 %s182, %s186
          %s188 = smul.addr %s187, 128
          %s189 = scalar_lea.hbm %s1, %s188
          %s190 = sshll.u32 %s179, 4
          %s191 = int_to_ptr.vmem [resolvable:$true] %s190
          %196 = dma.hbm_to_vmem [thread:$0]  %s189, 32768, %s191, %s176, 512, 256, 16
        $region24: #{l1_fidelity.1} parent=19 // pred_fallthru
          _
        // Predicated region
        $region25: #{l1_fidelity.1} parent=19 // pred_check
          %p197 = pneg %p112
        $region26: #{l1_fidelity.1} parent=19 // pred_check_branch
          %199 = sbr.rel (%p197) target = $region28
        $region27: #{l1_fidelity.1} parent=19 // pred_region
          %s200 = sand.u32 %s102, 1
          %s201 = scalar_lea.sflag [#allocation7], %s200
          %s202 = sand.u32 %s102, 1
          %s203 = smul.addr %s202, 4
          %s204 = scalar_lea.vmem [#allocation6], %s203
          %s205 = sadd.s32 %s22, %s23
          %s206 = smul.u32 2, %s205
          %s208 = ssub.s32 64, 64
          %209 = vsyncadd %s201, %s208
          %s210 = smul.addr %s206, 32
          %s211 = scalar_lea.hbm %s2, %s210
          %s213 = sshll.u32 %s204, 4
          %s214 = int_to_ptr.vmem [resolvable:$true] %s213
          %216 = dma.hbm_to_vmem [thread:$0]  %s211, 64, %s214, %s201
        $region28: #{l1_fidelity.1} parent=19 // pred_fallthru
          _
      $region20: #{l1_fidelity.1} parent=5 // pred_fallthru
        _
      %p217 = scmp.le.s32.totalorder 1, %s15
      %p218 = scmp.lt.s32.totalorder %s15, 3
      %p219 = pnand %p217, %p218
      %p220 = pneg %p219
      // Predicated region
      $region29: #{l1_fidelity.1} parent=5 // pred_check
        _
      $region30: #{l1_fidelity.1} parent=5 // pred_check_branch
        %222 = sbr.rel (%p219) target = $region32
      $region31: #{l1_fidelity.1} parent=5 // pred_region
        %s223 = ssub.s32 %s15, 1
        %s224 = sand.u32 %s77, 1
        %s225 = scalar_lea.sflag [#allocation5], %s224
        %s226 = sand.u32 %s77, 1
        %s227 = smul.addr %s226, 2048
        %s228 = scalar_lea.vmem [#allocation4], %s227
        // Predicated region
        $region33: #{l1_fidelity.1} parent=31 // pred_check
          %p229 = pneg %p90
        $region34: #{l1_fidelity.1} parent=31 // pred_check_branch
          %231 = sbr.rel (%p229) target = $region36
        $region35: #{l1_fidelity.1} parent=31 // pred_region
          %232 = dma.done %s225, 32768
        $region36: #{l1_fidelity.1} parent=31 // pred_fallthru
          _
        %s233 = sand.u32 %s105, 1
        %s234 = scalar_lea.sflag [#allocation7], %s233
        %s235 = sand.u32 %s105, 1
        %s236 = smul.addr %s235, 4
        %s237 = scalar_lea.vmem [#allocation6], %s236
        // Predicated region
        $region37: #{l1_fidelity.1} parent=31 // pred_check
          %p238 = pneg %p118
        $region38: #{l1_fidelity.1} parent=31 // pred_check_branch
          %240 = sbr.rel (%p238) target = $region40
        $region39: #{l1_fidelity.1} parent=31 // pred_region
          %241 = dma.done %s234, 64
        $region40: #{l1_fidelity.1} parent=31 // pred_fallthru
          _
        %s242 = smul.u32 8, %s27
        %p243 = scmp.lt.s32.totalorder %s242, 7
        %s244 = scalar_select %p243, %s242, 7
        %s245 = smul.addr %s244, 2
        %s246 = scalar_lea.vmem %s0, %s245
        %p247 = pneg %p60
        %p248 = pneg %p57
        %s249 = sand.u32 %s77, 1
        %s250 = scalar_lea.sflag [#allocation5], %s249
        %s251 = sand.u32 %s77, 1
        %s252 = smul.addr %s251, 2048
        %s253 = scalar_lea.vmem [#allocation4], %s252
        %p254 = pneg %p90
        %p255 = pneg %p87
        %s256 = sand.u32 %s105, 1
        %s257 = scalar_lea.sflag [#allocation7], %s256
        %s258 = sand.u32 %s105, 1
        %s259 = smul.addr %s258, 4
        %s260 = scalar_lea.vmem [#allocation6], %s259
        %p261 = pneg %p118
        %p262 = pneg %p115
        %p263 = pneg %p144
        %p264 = pneg %p141
        %p265 = scmp.lt.s32.totalorder %s25, 1
        %s266 = scalar_select %p265, %s25, 1
        %s267 = scalar_lea.vmem %s3, %s266
        %s268 = smul.u32 8, %s27
        %p269 = scmp.lt.s32.totalorder %s268, 7
        %s270 = scalar_select %p269, %s268, 7
        %s271 = smul.addr %s270, 2
        %s272 = scalar_lea.vmem %s0, %s271
        %s273 = smul.u32 8, %s27
        %s274 = sadd.s32 %s25, %s26
        %s275 = smul.u32 128, %s27
        %s276 = smul.u32 2, %s274
        %s277 = sadd.s32 %s25, %s26
        %s278 = smul.u32 2, %s277
        %p279 = scmp.lt.s32.totalorder %s25, 1
        %s280 = scalar_select %p279, %s25, 1
        %s281 = scalar_lea.vmem %s3, %s280
        %p282 = scmp.eq.s32.totalorder %s26, 0
        %p283 = scmp.eq.s32.totalorder %s27, 0
        %p284 = pnand %p282, %p283
        %p285 = pneg %p284
        // Predicated region
        $region41: #{l1_fidelity.1} parent=31 // pred_check
          _
        $region42: #{l1_fidelity.1} parent=31 // pred_check_branch
          %287 = sbr.rel (%p284) target = $region44
        $region43: #{l1_fidelity.1} parent=31 // pred_region
          %288 = vst [vmem:[#allocation3] sm:$0xf] 0.0
        $region44: #{l1_fidelity.1} parent=31 // pred_fallthru
          _
        // Predicated region
        $region45: #{l1_fidelity.1} parent=31 // pred_check
          %p289 = pneg %p283
        $region46: #{l1_fidelity.1} parent=31 // pred_check_branch
          %291 = sbr.rel (%p289) target = $region48
        $region47: #{l1_fidelity.1} parent=31 // pred_region
          %292 = vst [vmem:[#allocation2] sm:$0xf] 0.0
        $region48: #{l1_fidelity.1} parent=31 // pred_fallthru
          _
        %v293 = vld [vmem:[#allocation2] sm:$0xf]
        %v294 = vld [vmem:[%s272] sm:$0xff]
        %v295 = vld [vmem:[%s272 + $0x8] sm:$0xff]
        %v296 = vld [vmem:[%s228] sm:$0xff]
        %v297 = vld [vmem:[%s228 + $0x8] sm:$0xff]
        %v298 = vld [vmem:[%s228 + $0x10] sm:$0xff]
        %v299 = vld [vmem:[%s228 + $0x18] sm:$0xff]
        %v300 = vld [vmem:[%s228 + $0x20] sm:$0xff]
        %v301 = vld [vmem:[%s228 + $0x28] sm:$0xff]
        %v302 = vld [vmem:[%s228 + $0x30] sm:$0xff]
        %v303 = vld [vmem:[%s228 + $0x38] sm:$0xff]
        %v304 = vld [vmem:[%s228 + $0x40] sm:$0xff]
        %v305 = vld [vmem:[%s228 + $0x48] sm:$0xff]
        %v306 = vld [vmem:[%s228 + $0x50] sm:$0xff]
        %v307 = vld [vmem:[%s228 + $0x58] sm:$0xff]
        %v308 = vld [vmem:[%s228 + $0x60] sm:$0xff]
        %v309 = vld [vmem:[%s228 + $0x68] sm:$0xff]
        %v310 = vld [vmem:[%s228 + $0x70] sm:$0xff]
        %v311 = vld [vmem:[%s228 + $0x78] sm:$0xff]
        %v312 = vld [vmem:[%s228 + $0x80] sm:$0xff]
        %v313 = vld [vmem:[%s228 + $0x88] sm:$0xff]
        %v314 = vld [vmem:[%s228 + $0x90] sm:$0xff]
        %v315 = vld [vmem:[%s228 + $0x98] sm:$0xff]
        %v316 = vld [vmem:[%s228 + $0xa0] sm:$0xff]
        %v317 = vld [vmem:[%s228 + $0xa8] sm:$0xff]
        %v318 = vld [vmem:[%s228 + $0xb0] sm:$0xff]
        %v319 = vld [vmem:[%s228 + $0xb8] sm:$0xff]
        %v320 = vld [vmem:[%s228 + $0xc0] sm:$0xff]
        %v321 = vld [vmem:[%s228 + $0xc8] sm:$0xff]
        %v322 = vld [vmem:[%s228 + $0xd0] sm:$0xff]
        %v323 = vld [vmem:[%s228 + $0xd8] sm:$0xff]
        %v324 = vld [vmem:[%s228 + $0xe0] sm:$0xff]
        %v325 = vld [vmem:[%s228 + $0xe8] sm:$0xff]
        %v326 = vld [vmem:[%s228 + $0xf0] sm:$0xff]
        %v327 = vld [vmem:[%s228 + $0xf8] sm:$0xff]
        %v328 = vld [vmem:[%s228 + $0x100] sm:$0xff]
        %v329 = vld [vmem:[%s228 + $0x108] sm:$0xff]
        %v330 = vld [vmem:[%s228 + $0x110] sm:$0xff]
        %v331 = vld [vmem:[%s228 + $0x118] sm:$0xff]
        %v332 = vld [vmem:[%s228 + $0x120] sm:$0xff]
        %v333 = vld [vmem:[%s228 + $0x128] sm:$0xff]
        %v334 = vld [vmem:[%s228 + $0x130] sm:$0xff]
        %v335 = vld [vmem:[%s228 + $0x138] sm:$0xff]
        %v336 = vld [vmem:[%s228 + $0x140] sm:$0xff]
        %v337 = vld [vmem:[%s228 + $0x148] sm:$0xff]
        %v338 = vld [vmem:[%s228 + $0x150] sm:$0xff]
        %v339 = vld [vmem:[%s228 + $0x158] sm:$0xff]
        %v340 = vld [vmem:[%s228 + $0x160] sm:$0xff]
        %v341 = vld [vmem:[%s228 + $0x168] sm:$0xff]
        %v342 = vld [vmem:[%s228 + $0x170] sm:$0xff]
        %v343 = vld [vmem:[%s228 + $0x178] sm:$0xff]
        %v344 = vld [vmem:[%s228 + $0x180] sm:$0xff]
        %v345 = vld [vmem:[%s228 + $0x188] sm:$0xff]
        %v346 = vld [vmem:[%s228 + $0x190] sm:$0xff]
        %v347 = vld [vmem:[%s228 + $0x198] sm:$0xff]
        %v348 = vld [vmem:[%s228 + $0x1a0] sm:$0xff]
        %v349 = vld [vmem:[%s228 + $0x1a8] sm:$0xff]
        %v350 = vld [vmem:[%s228 + $0x1b0] sm:$0xff]
        %v351 = vld [vmem:[%s228 + $0x1b8] sm:$0xff]
        %v352 = vld [vmem:[%s228 + $0x1c0] sm:$0xff]
        %v353 = vld [vmem:[%s228 + $0x1c8] sm:$0xff]
        %v354 = vld [vmem:[%s228 + $0x1d0] sm:$0xff]
        %v355 = vld [vmem:[%s228 + $0x1d8] sm:$0xff]
        %v356 = vld [vmem:[%s228 + $0x1e0] sm:$0xff]
        %v357 = vld [vmem:[%s228 + $0x1e8] sm:$0xff]
        %v358 = vld [vmem:[%s228 + $0x1f0] sm:$0xff]
        %v359 = vld [vmem:[%s228 + $0x1f8] sm:$0xff]
        %v360 = vld [vmem:[%s228 + $0x200] sm:$0xff]
        %v361 = vld [vmem:[%s228 + $0x208] sm:$0xff]
        %v362 = vld [vmem:[%s228 + $0x210] sm:$0xff]
        %v363 = vld [vmem:[%s228 + $0x218] sm:$0xff]
        %v364 = vld [vmem:[%s228 + $0x220] sm:$0xff]
        %v365 = vld [vmem:[%s228 + $0x228] sm:$0xff]
        %v366 = vld [vmem:[%s228 + $0x230] sm:$0xff]
        %v367 = vld [vmem:[%s228 + $0x238] sm:$0xff]
        %v368 = vld [vmem:[%s228 + $0x240] sm:$0xff]
        %v369 = vld [vmem:[%s228 + $0x248] sm:$0xff]
        %v370 = vld [vmem:[%s228 + $0x250] sm:$0xff]
        %v371 = vld [vmem:[%s228 + $0x258] sm:$0xff]
        %v372 = vld [vmem:[%s228 + $0x260] sm:$0xff]
        %v373 = vld [vmem:[%s228 + $0x268] sm:$0xff]
        %v374 = vld [vmem:[%s228 + $0x270] sm:$0xff]
        %v375 = vld [vmem:[%s228 + $0x278] sm:$0xff]
        %v376 = vld [vmem:[%s228 + $0x280] sm:$0xff]
        %v377 = vld [vmem:[%s228 + $0x288] sm:$0xff]
        %v378 = vld [vmem:[%s228 + $0x290] sm:$0xff]
        %v379 = vld [vmem:[%s228 + $0x298] sm:$0xff]
        %v380 = vld [vmem:[%s228 + $0x2a0] sm:$0xff]
        %v381 = vld [vmem:[%s228 + $0x2a8] sm:$0xff]
        %v382 = vld [vmem:[%s228 + $0x2b0] sm:$0xff]
        %v383 = vld [vmem:[%s228 + $0x2b8] sm:$0xff]
        %v384 = vld [vmem:[%s228 + $0x2c0] sm:$0xff]
        %v385 = vld [vmem:[%s228 + $0x2c8] sm:$0xff]
        %v386 = vld [vmem:[%s228 + $0x2d0] sm:$0xff]
        %v387 = vld [vmem:[%s228 + $0x2d8] sm:$0xff]
        %v388 = vld [vmem:[%s228 + $0x2e0] sm:$0xff]
        %v389 = vld [vmem:[%s228 + $0x2e8] sm:$0xff]
        %v390 = vld [vmem:[%s228 + $0x2f0] sm:$0xff]
        %v391 = vld [vmem:[%s228 + $0x2f8] sm:$0xff]
        %v392 = vld [vmem:[%s228 + $0x300] sm:$0xff]
        %v393 = vld [vmem:[%s228 + $0x308] sm:$0xff]
        %v394 = vld [vmem:[%s228 + $0x310] sm:$0xff]
        %v395 = vld [vmem:[%s228 + $0x318] sm:$0xff]
        %v396 = vld [vmem:[%s228 + $0x320] sm:$0xff]
        %v397 = vld [vmem:[%s228 + $0x328] sm:$0xff]
        %v398 = vld [vmem:[%s228 + $0x330] sm:$0xff]
        %v399 = vld [vmem:[%s228 + $0x338] sm:$0xff]
        %v400 = vld [vmem:[%s228 + $0x340] sm:$0xff]
        %v401 = vld [vmem:[%s228 + $0x348] sm:$0xff]
        %v402 = vld [vmem:[%s228 + $0x350] sm:$0xff]
        %v403 = vld [vmem:[%s228 + $0x358] sm:$0xff]
        %v404 = vld [vmem:[%s228 + $0x360] sm:$0xff]
        %v405 = vld [vmem:[%s228 + $0x368] sm:$0xff]
        %v406 = vld [vmem:[%s228 + $0x370] sm:$0xff]
        %v407 = vld [vmem:[%s228 + $0x378] sm:$0xff]
        %v408 = vld [vmem:[%s228 + $0x380] sm:$0xff]
        %v409 = vld [vmem:[%s228 + $0x388] sm:$0xff]
        %v410 = vld [vmem:[%s228 + $0x390] sm:$0xff]
        %v411 = vld [vmem:[%s228 + $0x398] sm:$0xff]
        %v412 = vld [vmem:[%s228 + $0x3a0] sm:$0xff]
        %v413 = vld [vmem:[%s228 + $0x3a8] sm:$0xff]
        %v414 = vld [vmem:[%s228 + $0x3b0] sm:$0xff]
        %v415 = vld [vmem:[%s228 + $0x3b8] sm:$0xff]
        %v416 = vld [vmem:[%s228 + $0x3c0] sm:$0xff]
        %v417 = vld [vmem:[%s228 + $0x3c8] sm:$0xff]
        %v418 = vld [vmem:[%s228 + $0x3d0] sm:$0xff]
        %v419 = vld [vmem:[%s228 + $0x3d8] sm:$0xff]
        %v420 = vld [vmem:[%s228 + $0x3e0] sm:$0xff]
        %v421 = vld [vmem:[%s228 + $0x3e8] sm:$0xff]
        %v422 = vld [vmem:[%s228 + $0x3f0] sm:$0xff]
        %v423 = vld [vmem:[%s228 + $0x3f8] sm:$0xff]
        %v424 = vld [vmem:[%s228 + $0x400] sm:$0xff]
        %v425 = vld [vmem:[%s228 + $0x408] sm:$0xff]
        %v426 = vld [vmem:[%s228 + $0x410] sm:$0xff]
        %v427 = vld [vmem:[%s228 + $0x418] sm:$0xff]
        %v428 = vld [vmem:[%s228 + $0x420] sm:$0xff]
        %v429 = vld [vmem:[%s228 + $0x428] sm:$0xff]
        %v430 = vld [vmem:[%s228 + $0x430] sm:$0xff]
        %v431 = vld [vmem:[%s228 + $0x438] sm:$0xff]
        %v432 = vld [vmem:[%s228 + $0x440] sm:$0xff]
        %v433 = vld [vmem:[%s228 + $0x448] sm:$0xff]
        %v434 = vld [vmem:[%s228 + $0x450] sm:$0xff]
        %v435 = vld [vmem:[%s228 + $0x458] sm:$0xff]
        %v436 = vld [vmem:[%s228 + $0x460] sm:$0xff]
        %v437 = vld [vmem:[%s228 + $0x468] sm:$0xff]
        %v438 = vld [vmem:[%s228 + $0x470] sm:$0xff]
        %v439 = vld [vmem:[%s228 + $0x478] sm:$0xff]
        %v440 = vld [vmem:[%s228 + $0x480] sm:$0xff]
        %v441 = vld [vmem:[%s228 + $0x488] sm:$0xff]
        %v442 = vld [vmem:[%s228 + $0x490] sm:$0xff]
        %v443 = vld [vmem:[%s228 + $0x498] sm:$0xff]
        %v444 = vld [vmem:[%s228 + $0x4a0] sm:$0xff]
        %v445 = vld [vmem:[%s228 + $0x4a8] sm:$0xff]
        %v446 = vld [vmem:[%s228 + $0x4b0] sm:$0xff]
        %v447 = vld [vmem:[%s228 + $0x4b8] sm:$0xff]
        %v448 = vld [vmem:[%s228 + $0x4c0] sm:$0xff]
        %v449 = vld [vmem:[%s228 + $0x4c8] sm:$0xff]
        %v450 = vld [vmem:[%s228 + $0x4d0] sm:$0xff]
        %v451 = vld [vmem:[%s228 + $0x4d8] sm:$0xff]
        %v452 = vld [vmem:[%s228 + $0x4e0] sm:$0xff]
        %v453 = vld [vmem:[%s228 + $0x4e8] sm:$0xff]
        %v454 = vld [vmem:[%s228 + $0x4f0] sm:$0xff]
        %v455 = vld [vmem:[%s228 + $0x4f8] sm:$0xff]
        %v456 = vld [vmem:[%s228 + $0x500] sm:$0xff]
        %v457 = vld [vmem:[%s228 + $0x508] sm:$0xff]
        %v458 = vld [vmem:[%s228 + $0x510] sm:$0xff]
        %v459 = vld [vmem:[%s228 + $0x518] sm:$0xff]
        %v460 = vld [vmem:[%s228 + $0x520] sm:$0xff]
        %v461 = vld [vmem:[%s228 + $0x528] sm:$0xff]
        %v462 = vld [vmem:[%s228 + $0x530] sm:$0xff]
        %v463 = vld [vmem:[%s228 + $0x538] sm:$0xff]
        %v464 = vld [vmem:[%s228 + $0x540] sm:$0xff]
        %v465 = vld [vmem:[%s228 + $0x548] sm:$0xff]
        %v466 = vld [vmem:[%s228 + $0x550] sm:$0xff]
        %v467 = vld [vmem:[%s228 + $0x558] sm:$0xff]
        %v468 = vld [vmem:[%s228 + $0x560] sm:$0xff]
        %v469 = vld [vmem:[%s228 + $0x568] sm:$0xff]
        %v470 = vld [vmem:[%s228 + $0x570] sm:$0xff]
        %v471 = vld [vmem:[%s228 + $0x578] sm:$0xff]
        %v472 = vld [vmem:[%s228 + $0x580] sm:$0xff]
        %v473 = vld [vmem:[%s228 + $0x588] sm:$0xff]
        %v474 = vld [vmem:[%s228 + $0x590] sm:$0xff]
        %v475 = vld [vmem:[%s228 + $0x598] sm:$0xff]
        %v476 = vld [vmem:[%s228 + $0x5a0] sm:$0xff]
        %v477 = vld [vmem:[%s228 + $0x5a8] sm:$0xff]
        %v478 = vld [vmem:[%s228 + $0x5b0] sm:$0xff]
        %v479 = vld [vmem:[%s228 + $0x5b8] sm:$0xff]
        %v480 = vld [vmem:[%s228 + $0x5c0] sm:$0xff]
        %v481 = vld [vmem:[%s228 + $0x5c8] sm:$0xff]
        %v482 = vld [vmem:[%s228 + $0x5d0] sm:$0xff]
        %v483 = vld [vmem:[%s228 + $0x5d8] sm:$0xff]
        %v484 = vld [vmem:[%s228 + $0x5e0] sm:$0xff]
        %v485 = vld [vmem:[%s228 + $0x5e8] sm:$0xff]
        %v486 = vld [vmem:[%s228 + $0x5f0] sm:$0xff]
        %v487 = vld [vmem:[%s228 + $0x5f8] sm:$0xff]
        %v488 = vld [vmem:[%s228 + $0x600] sm:$0xff]
        %v489 = vld [vmem:[%s228 + $0x608] sm:$0xff]
        %v490 = vld [vmem:[%s228 + $0x610] sm:$0xff]
        %v491 = vld [vmem:[%s228 + $0x618] sm:$0xff]
        %v492 = vld [vmem:[%s228 + $0x620] sm:$0xff]
        %v493 = vld [vmem:[%s228 + $0x628] sm:$0xff]
        %v494 = vld [vmem:[%s228 + $0x630] sm:$0xff]
        %v495 = vld [vmem:[%s228 + $0x638] sm:$0xff]
        %v496 = vld [vmem:[%s228 + $0x640] sm:$0xff]
        %v497 = vld [vmem:[%s228 + $0x648] sm:$0xff]
        %v498 = vld [vmem:[%s228 + $0x650] sm:$0xff]
        %v499 = vld [vmem:[%s228 + $0x658] sm:$0xff]
        %v500 = vld [vmem:[%s228 + $0x660] sm:$0xff]
        %v501 = vld [vmem:[%s228 + $0x668] sm:$0xff]
        %v502 = vld [vmem:[%s228 + $0x670] sm:$0xff]
        %v503 = vld [vmem:[%s228 + $0x678] sm:$0xff]
        %v504 = vld [vmem:[%s228 + $0x680] sm:$0xff]
        %v505 = vld [vmem:[%s228 + $0x688] sm:$0xff]
        %v506 = vld [vmem:[%s228 + $0x690] sm:$0xff]
        %v507 = vld [vmem:[%s228 + $0x698] sm:$0xff]
        %v508 = vld [vmem:[%s228 + $0x6a0] sm:$0xff]
        %v509 = vld [vmem:[%s228 + $0x6a8] sm:$0xff]
        %v510 = vld [vmem:[%s228 + $0x6b0] sm:$0xff]
        %v511 = vld [vmem:[%s228 + $0x6b8] sm:$0xff]
        %v512 = vld [vmem:[%s228 + $0x6c0] sm:$0xff]
        %v513 = vld [vmem:[%s228 + $0x6c8] sm:$0xff]
        %v514 = vld [vmem:[%s228 + $0x6d0] sm:$0xff]
        %v515 = vld [vmem:[%s228 + $0x6d8] sm:$0xff]
        %v516 = vld [vmem:[%s228 + $0x6e0] sm:$0xff]
        %v517 = vld [vmem:[%s228 + $0x6e8] sm:$0xff]
        %v518 = vld [vmem:[%s228 + $0x6f0] sm:$0xff]
        %v519 = vld [vmem:[%s228 + $0x6f8] sm:$0xff]
        %v520 = vld [vmem:[%s228 + $0x700] sm:$0xff]
        %v521 = vld [vmem:[%s228 + $0x708] sm:$0xff]
        %v522 = vld [vmem:[%s228 + $0x710] sm:$0xff]
        %v523 = vld [vmem:[%s228 + $0x718] sm:$0xff]
        %v524 = vld [vmem:[%s228 + $0x720] sm:$0xff]
        %v525 = vld [vmem:[%s228 + $0x728] sm:$0xff]
        %v526 = vld [vmem:[%s228 + $0x730] sm:$0xff]
        %v527 = vld [vmem:[%s228 + $0x738] sm:$0xff]
        %v528 = vld [vmem:[%s228 + $0x740] sm:$0xff]
        %v529 = vld [vmem:[%s228 + $0x748] sm:$0xff]
        %v530 = vld [vmem:[%s228 + $0x750] sm:$0xff]
        %v531 = vld [vmem:[%s228 + $0x758] sm:$0xff]
        %v532 = vld [vmem:[%s228 + $0x760] sm:$0xff]
        %v533 = vld [vmem:[%s228 + $0x768] sm:$0xff]
        %v534 = vld [vmem:[%s228 + $0x770] sm:$0xff]
        %v535 = vld [vmem:[%s228 + $0x778] sm:$0xff]
        %v536 = vld [vmem:[%s228 + $0x780] sm:$0xff]
        %v537 = vld [vmem:[%s228 + $0x788] sm:$0xff]
        %v538 = vld [vmem:[%s228 + $0x790] sm:$0xff]
        %v539 = vld [vmem:[%s228 + $0x798] sm:$0xff]
        %v540 = vld [vmem:[%s228 + $0x7a0] sm:$0xff]
        %v541 = vld [vmem:[%s228 + $0x7a8] sm:$0xff]
        %v542 = vld [vmem:[%s228 + $0x7b0] sm:$0xff]
        %v543 = vld [vmem:[%s228 + $0x7b8] sm:$0xff]
        %v544 = vld [vmem:[%s228 + $0x7c0] sm:$0xff]
        %v545 = vld [vmem:[%s228 + $0x7c8] sm:$0xff]
        %v546 = vld [vmem:[%s228 + $0x7d0] sm:$0xff]
        %v547 = vld [vmem:[%s228 + $0x7d8] sm:$0xff]
        %v548 = vld [vmem:[%s228 + $0x7e0] sm:$0xff]
        %v549 = vld [vmem:[%s228 + $0x7e8] sm:$0xff]
        %v550 = vld [vmem:[%s228 + $0x7f0] sm:$0xff]
        %v551 = vld [vmem:[%s228 + $0x7f8] sm:$0xff]
        %v554 = vcombine.high %v294, %v294
        %v556 = vunpack.c.l.s4 1983009808
        %v557 = vunpack.c.0.s8 %v556
        %v558 = vlaneseq
        %v559 = vshrl.u32 %v558, 7
        %v560 = vsub.s32 %v557, %v559
        %v561 = vrot.slane %v294, %v560
        %v563 = vunpack.c.l.s4 1983009808
        %v564 = vunpack.c.0.s8 %v563
        %v565 = vlaneseq
        %v566 = vshrl.u32 %v565, 7
        %v567 = vsub.s32 %v564, %v566
        %v568 = vrot.slane %v554, %v567
        %v569 = vcombine.high %v561, %v561
        %v570 = vcombine.high %v568, %v568
        %v571 = vcombine.high %v295, %v295
        %v573 = vunpack.c.l.s4 1983009808
        %v574 = vunpack.c.0.s8 %v573
        %v575 = vlaneseq
        %v576 = vshrl.u32 %v575, 7
        %v577 = vsub.s32 %v574, %v576
        %v578 = vrot.slane %v295, %v577
        %v580 = vunpack.c.l.s4 1983009808
        %v581 = vunpack.c.0.s8 %v580
        %v582 = vlaneseq
        %v583 = vshrl.u32 %v582, 7
        %v584 = vsub.s32 %v581, %v583
        %v585 = vrot.slane %v571, %v584
        %v586 = vcombine.high %v578, %v578
        %v587 = vcombine.high %v585, %v585
        %596 = vmatprep.subr.mxu0 %v327
        %597 = vmatpush1.msra.mxu0 %v326
        %598 = vmatprep.subr.mxu0 %v325
        %599 = vmatpush1.msra.mxu0 %v324
        %600 = vmatprep.subr.mxu0 %v323
        %601 = vmatpush1.msra.mxu0 %v322
        %602 = vmatprep.subr.mxu0 %v321
        %603 = vmatpush1.msra.mxu0 %v320
        %604 = vmatprep.subr.mxu0 %v319
        %605 = vmatpush1.msra.mxu0 %v318
        %606 = vmatprep.subr.mxu0 %v317
        %607 = vmatpush1.msra.mxu0 %v316
        %608 = vmatprep.subr.mxu0 %v315
        %609 = vmatpush1.msra.mxu0 %v314
        %610 = vmatprep.subr.mxu0 %v313
        %611 = vmatpush1.msra.mxu0 %v312
        %612 = vmatprep.subr.mxu0 %v311
        %613 = vmatpush1.msra.mxu0 %v310
        %614 = vmatprep.subr.mxu0 %v309
        %615 = vmatpush1.msra.mxu0 %v308
        %616 = vmatprep.subr.mxu0 %v307
        %617 = vmatpush1.msra.mxu0 %v306
        %618 = vmatprep.subr.mxu0 %v305
        %619 = vmatpush1.msra.mxu0 %v304
        %620 = vmatprep.subr.mxu0 %v303
        %621 = vmatpush1.msra.mxu0 %v302
        %622 = vmatprep.subr.mxu0 %v301
        %623 = vmatpush1.msra.mxu0 %v300
        %624 = vmatprep.subr.mxu0 %v299
        %625 = vmatpush1.msra.mxu0 %v298
        %626 = vmatprep.subr.mxu0 %v297
        %627 = vmatpush1.msra.mxu0 %v296
        %628 = vmatprep.subr.mxu0 %v359
        %629 = vmatpush2.msra.mxu0 %v358
        %630 = vmatprep.subr.mxu0 %v357
        %631 = vmatpush2.msra.mxu0 %v356
        %632 = vmatprep.subr.mxu0 %v355
        %633 = vmatpush2.msra.mxu0 %v354
        %634 = vmatprep.subr.mxu0 %v353
        %635 = vmatpush2.msra.mxu0 %v352
        %636 = vmatprep.subr.mxu0 %v351
        %637 = vmatpush2.msra.mxu0 %v350
        %638 = vmatprep.subr.mxu0 %v349
        %639 = vmatpush2.msra.mxu0 %v348
        %640 = vmatprep.subr.mxu0 %v347
        %641 = vmatpush2.msra.mxu0 %v346
        %642 = vmatprep.subr.mxu0 %v345
        %643 = vmatpush2.msra.mxu0 %v344
        %644 = vmatprep.subr.mxu0 %v343
        %645 = vmatpush2.msra.mxu0 %v342
        %646 = vmatprep.subr.mxu0 %v341
        %647 = vmatpush2.msra.mxu0 %v340
        %648 = vmatprep.subr.mxu0 %v339
        %649 = vmatpush2.msra.mxu0 %v338
        %650 = vmatprep.subr.mxu0 %v337
        %651 = vmatpush2.msra.mxu0 %v336
        %652 = vmatprep.subr.mxu0 %v335
        %653 = vmatpush2.msra.mxu0 %v334
        %654 = vmatprep.subr.mxu0 %v333
        %655 = vmatpush2.msra.mxu0 %v332
        %656 = vmatprep.subr.mxu0 %v331
        %657 = vmatpush2.msra.mxu0 %v330
        %658 = vmatprep.subr.mxu0 %v329
        %659 = vmatpush2.msra.mxu0 %v328
        %660 = vmatprep.mubr.f32.mxu0 %v569
        %661 = vmatmul.mubr.f32.gmra.mxu0 %v561
        %v662 = vpop.f32.mrf.mxu0
        %v663 = vadd.f32 0.0, %v662
        %v664 = vpop.f32.mrf.mxu0
        %v665 = vadd.f32 0.0, %v664
        %666 = vdwg.mxu0
        %667 = vmatprep.subr.mxu0 %v391
        %668 = vmatpush1.msra.mxu0 %v390
        %669 = vmatprep.subr.mxu0 %v389
        %670 = vmatpush1.msra.mxu0 %v388
        %671 = vmatprep.subr.mxu0 %v387
        %672 = vmatpush1.msra.mxu0 %v386
        %673 = vmatprep.subr.mxu0 %v385
        %674 = vmatpush1.msra.mxu0 %v384
        %675 = vmatprep.subr.mxu0 %v383
        %676 = vmatpush1.msra.mxu0 %v382
        %677 = vmatprep.subr.mxu0 %v381
        %678 = vmatpush1.msra.mxu0 %v380
        %679 = vmatprep.subr.mxu0 %v379
        %680 = vmatpush1.msra.mxu0 %v378
        %681 = vmatprep.subr.mxu0 %v377
        %682 = vmatpush1.msra.mxu0 %v376
        %683 = vmatprep.subr.mxu0 %v375
        %684 = vmatpush1.msra.mxu0 %v374
        %685 = vmatprep.subr.mxu0 %v373
        %686 = vmatpush1.msra.mxu0 %v372
        %687 = vmatprep.subr.mxu0 %v371
        %688 = vmatpush1.msra.mxu0 %v370
        %689 = vmatprep.subr.mxu0 %v369
        %690 = vmatpush1.msra.mxu0 %v368
        %691 = vmatprep.subr.mxu0 %v367
        %692 = vmatpush1.msra.mxu0 %v366
        %693 = vmatprep.subr.mxu0 %v365
        %694 = vmatpush1.msra.mxu0 %v364
        %695 = vmatprep.subr.mxu0 %v363
        %696 = vmatpush1.msra.mxu0 %v362
        %697 = vmatprep.subr.mxu0 %v361
        %698 = vmatpush1.msra.mxu0 %v360
        %699 = vmatprep.subr.mxu0 %v423
        %700 = vmatpush2.msra.mxu0 %v422
        %701 = vmatprep.subr.mxu0 %v421
        %702 = vmatpush2.msra.mxu0 %v420
        %703 = vmatprep.subr.mxu0 %v419
        %704 = vmatpush2.msra.mxu0 %v418
        %705 = vmatprep.subr.mxu0 %v417
        %706 = vmatpush2.msra.mxu0 %v416
        %707 = vmatprep.subr.mxu0 %v415
        %708 = vmatpush2.msra.mxu0 %v414
        %709 = vmatprep.subr.mxu0 %v413
        %710 = vmatpush2.msra.mxu0 %v412
        %711 = vmatprep.subr.mxu0 %v411
        %712 = vmatpush2.msra.mxu0 %v410
        %713 = vmatprep.subr.mxu0 %v409
        %714 = vmatpush2.msra.mxu0 %v408
        %715 = vmatprep.subr.mxu0 %v407
        %716 = vmatpush2.msra.mxu0 %v406
        %717 = vmatprep.subr.mxu0 %v405
        %718 = vmatpush2.msra.mxu0 %v404
        %719 = vmatprep.subr.mxu0 %v403
        %720 = vmatpush2.msra.mxu0 %v402
        %721 = vmatprep.subr.mxu0 %v401
        %722 = vmatpush2.msra.mxu0 %v400
        %723 = vmatprep.subr.mxu0 %v399
        %724 = vmatpush2.msra.mxu0 %v398
        %725 = vmatprep.subr.mxu0 %v397
        %726 = vmatpush2.msra.mxu0 %v396
        %727 = vmatprep.subr.mxu0 %v395
        %728 = vmatpush2.msra.mxu0 %v394
        %729 = vmatprep.subr.mxu0 %v393
        %730 = vmatpush2.msra.mxu0 %v392
        %731 = vmatprep.mubr.f32.mxu0 %v570
        %732 = vmatmul.mubr.f32.gmra.mxu0 %v568
        %v733 = vpop.f32.mrf.mxu0
        %v734 = vadd.f32 %v663, %v733
        %v735 = vpop.f32.mrf.mxu0
        %v736 = vadd.f32 %v665, %v735
        %737 = vdwg.mxu0
        %738 = vmatprep.subr.mxu0 %v455
        %739 = vmatpush1.msra.mxu0 %v454
        %740 = vmatprep.subr.mxu0 %v453
        %741 = vmatpush1.msra.mxu0 %v452
        %742 = vmatprep.subr.mxu0 %v451
        %743 = vmatpush1.msra.mxu0 %v450
        %744 = vmatprep.subr.mxu0 %v449
        %745 = vmatpush1.msra.mxu0 %v448
        %746 = vmatprep.subr.mxu0 %v447
        %747 = vmatpush1.msra.mxu0 %v446
        %748 = vmatprep.subr.mxu0 %v445
        %749 = vmatpush1.msra.mxu0 %v444
        %750 = vmatprep.subr.mxu0 %v443
        %751 = vmatpush1.msra.mxu0 %v442
        %752 = vmatprep.subr.mxu0 %v441
        %753 = vmatpush1.msra.mxu0 %v440
        %754 = vmatprep.subr.mxu0 %v439
        %755 = vmatpush1.msra.mxu0 %v438
        %756 = vmatprep.subr.mxu0 %v437
        %757 = vmatpush1.msra.mxu0 %v436
        %758 = vmatprep.subr.mxu0 %v435
        %759 = vmatpush1.msra.mxu0 %v434
        %760 = vmatprep.subr.mxu0 %v433
        %761 = vmatpush1.msra.mxu0 %v432
        %762 = vmatprep.subr.mxu0 %v431
        %763 = vmatpush1.msra.mxu0 %v430
        %764 = vmatprep.subr.mxu0 %v429
        %765 = vmatpush1.msra.mxu0 %v428
        %766 = vmatprep.subr.mxu0 %v427
        %767 = vmatpush1.msra.mxu0 %v426
        %768 = vmatprep.subr.mxu0 %v425
        %769 = vmatpush1.msra.mxu0 %v424
        %770 = vmatprep.subr.mxu0 %v487
        %771 = vmatpush2.msra.mxu0 %v486
        %772 = vmatprep.subr.mxu0 %v485
        %773 = vmatpush2.msra.mxu0 %v484
        %774 = vmatprep.subr.mxu0 %v483
        %775 = vmatpush2.msra.mxu0 %v482
        %776 = vmatprep.subr.mxu0 %v481
        %777 = vmatpush2.msra.mxu0 %v480
        %778 = vmatprep.subr.mxu0 %v479
        %779 = vmatpush2.msra.mxu0 %v478
        %780 = vmatprep.subr.mxu0 %v477
        %781 = vmatpush2.msra.mxu0 %v476
        %782 = vmatprep.subr.mxu0 %v475
        %783 = vmatpush2.msra.mxu0 %v474
        %784 = vmatprep.subr.mxu0 %v473
        %785 = vmatpush2.msra.mxu0 %v472
        %786 = vmatprep.subr.mxu0 %v471
        %787 = vmatpush2.msra.mxu0 %v470
        %788 = vmatprep.subr.mxu0 %v469
        %789 = vmatpush2.msra.mxu0 %v468
        %790 = vmatprep.subr.mxu0 %v467
        %791 = vmatpush2.msra.mxu0 %v466
        %792 = vmatprep.subr.mxu0 %v465
        %793 = vmatpush2.msra.mxu0 %v464
        %794 = vmatprep.subr.mxu0 %v463
        %795 = vmatpush2.msra.mxu0 %v462
        %796 = vmatprep.subr.mxu0 %v461
        %797 = vmatpush2.msra.mxu0 %v460
        %798 = vmatprep.subr.mxu0 %v459
        %799 = vmatpush2.msra.mxu0 %v458
        %800 = vmatprep.subr.mxu0 %v457
        %801 = vmatpush2.msra.mxu0 %v456
        %802 = vmatprep.mubr.f32.mxu0 %v586
        %803 = vmatmul.mubr.f32.gmra.mxu0 %v578
        %v804 = vpop.f32.mrf.mxu0
        %v805 = vadd.f32 %v734, %v804
        %v806 = vpop.f32.mrf.mxu0
        %v807 = vadd.f32 %v736, %v806
        %808 = vdwg.mxu0
        %809 = vmatprep.subr.mxu0 %v519
        %810 = vmatpush1.msra.mxu0 %v518
        %811 = vmatprep.subr.mxu0 %v517
        %812 = vmatpush1.msra.mxu0 %v516
        %813 = vmatprep.subr.mxu0 %v515
        %814 = vmatpush1.msra.mxu0 %v514
        %815 = vmatprep.subr.mxu0 %v513
        %816 = vmatpush1.msra.mxu0 %v512
        %817 = vmatprep.subr.mxu0 %v511
        %818 = vmatpush1.msra.mxu0 %v510
        %819 = vmatprep.subr.mxu0 %v509
        %820 = vmatpush1.msra.mxu0 %v508
        %821 = vmatprep.subr.mxu0 %v507
        %822 = vmatpush1.msra.mxu0 %v506
        %823 = vmatprep.subr.mxu0 %v505
        %824 = vmatpush1.msra.mxu0 %v504
        %825 = vmatprep.subr.mxu0 %v503
        %826 = vmatpush1.msra.mxu0 %v502
        %827 = vmatprep.subr.mxu0 %v501
        %828 = vmatpush1.msra.mxu0 %v500
        %829 = vmatprep.subr.mxu0 %v499
        %830 = vmatpush1.msra.mxu0 %v498
        %831 = vmatprep.subr.mxu0 %v497
        %832 = vmatpush1.msra.mxu0 %v496
        %833 = vmatprep.subr.mxu0 %v495
        %834 = vmatpush1.msra.mxu0 %v494
        %835 = vmatprep.subr.mxu0 %v493
        %836 = vmatpush1.msra.mxu0 %v492
        %837 = vmatprep.subr.mxu0 %v491
        %838 = vmatpush1.msra.mxu0 %v490
        %839 = vmatprep.subr.mxu0 %v489
        %840 = vmatpush1.msra.mxu0 %v488
        %841 = vmatprep.subr.mxu0 %v551
        %842 = vmatpush2.msra.mxu0 %v550
        %843 = vmatprep.subr.mxu0 %v549
        %844 = vmatpush2.msra.mxu0 %v548
        %845 = vmatprep.subr.mxu0 %v547
        %846 = vmatpush2.msra.mxu0 %v546
        %847 = vmatprep.subr.mxu0 %v545
        %848 = vmatpush2.msra.mxu0 %v544
        %849 = vmatprep.subr.mxu0 %v543
        %850 = vmatpush2.msra.mxu0 %v542
        %851 = vmatprep.subr.mxu0 %v541
        %852 = vmatpush2.msra.mxu0 %v540
        %853 = vmatprep.subr.mxu0 %v539
        %854 = vmatpush2.msra.mxu0 %v538
        %855 = vmatprep.subr.mxu0 %v537
        %856 = vmatpush2.msra.mxu0 %v536
        %857 = vmatprep.subr.mxu0 %v535
        %858 = vmatpush2.msra.mxu0 %v534
        %859 = vmatprep.subr.mxu0 %v533
        %860 = vmatpush2.msra.mxu0 %v532
        %861 = vmatprep.subr.mxu0 %v531
        %862 = vmatpush2.msra.mxu0 %v530
        %863 = vmatprep.subr.mxu0 %v529
        %864 = vmatpush2.msra.mxu0 %v528
        %865 = vmatprep.subr.mxu0 %v527
        %866 = vmatpush2.msra.mxu0 %v526
        %867 = vmatprep.subr.mxu0 %v525
        %868 = vmatpush2.msra.mxu0 %v524
        %869 = vmatprep.subr.mxu0 %v523
        %870 = vmatpush2.msra.mxu0 %v522
        %871 = vmatprep.subr.mxu0 %v521
        %872 = vmatpush2.msra.mxu0 %v520
        %873 = vmatprep.mubr.f32.mxu0 %v587
        %874 = vmatmul.mubr.f32.gmra.mxu0 %v585
        %v875 = vpop.f32.mrf.mxu0
        %v876 = vadd.f32 %v805, %v875
        %v877 = vpop.f32.mrf.mxu0
        %v878 = vadd.f32 %v807, %v877
        %879 = vdwg.mxu0
        %v882 = vcombine.low %v876, %v878
        %v884 = vunpack.c.l.s4 1983009808
        %v885 = vunpack.c.0.s8 %v884
        %v886 = vlaneseq
        %v887 = vshrl.u32 %v886, 7
        %v888 = vsub.s32 %v885, %v887
        %v889 = vrot.slane %v882, %v888
        %v891 = vadd.f32 %v293, %v889
        %892 = vst [vmem:[#allocation2] sm:$0xf] %v891
        // Predicated region
        $region49: #{l1_fidelity.1} parent=31 // pred_check
          %p893 = pneg %p283
        $region50: #{l1_fidelity.1} parent=31 // pred_check_branch
          %895 = sbr.rel (%p893) target = $region52
        $region51: #{l1_fidelity.1} parent=31 // pred_region
          %v896 = vld [vmem:[#allocation2] sm:$0xf]
          %v897 = vld [vmem:[%s237] sm:$0xf]
          %v898 = vsub.f32 %v896, %v897
          %v899 = vld [vmem:[#allocation3] sm:$0xf]
          %v900 = vand.u32 2147483647, %v898
          %v901 = vadd.f32 %v899, %v900
          %902 = vst [vmem:[#allocation3] sm:$0xf] %v901
        $region52: #{l1_fidelity.1} parent=31 // pred_fallthru
          _
        // Predicated region
        $region53: #{l1_fidelity.1} parent=31 // pred_check
          _
        $region54: #{l1_fidelity.1} parent=31 // pred_check_branch
          %904 = sbr.rel (%p284) target = $region56
        $region55: #{l1_fidelity.1} parent=31 // pred_region
          %v905 = vld [vmem:[#allocation3] sm:$0xf]
          %v908 = vunpack.c.l.s4 1983009808
          %v909 = vunpack.c.0.s8 %v908
          %v910 = vlaneseq
          %v911 = vshrl.u32 %v910, 7
          %v912 = vsub.s32 %v909, %v911
          %v913 = vrot.slane %v905, %v912
          %v914 = vcombine.high %v913, %v913
          %vm917 = vcmask 1041408
          %v918 = vsel %vm917, %v913, 0.0
          %v919 = vsel %vm917, %v914, 0.0
          %v920 = vadd.f32 %v918, %v919
          %921 = vadd.xlane.f32.xlu0 %v920
          %v922 = vpop.xlane.xlu0 %921
          %v924 = vlaneseq
          %v925 = vand.u32 %v924, 127
          %v926 = vlaneseq
          %v927 = vshrl.u32 %v926, 7
          %v928 = vsub.s32 %v925, %v927
          %v929 = vrot.slane %v922, %v928
          %vm931 = vcmask 8192
          %932 = vst.msk [vmem:[%s281] sm:$0x1] %vm931, %v929
        $region56: #{l1_fidelity.1} parent=31 // pred_fallthru
          _
        %p933 = scmp.lt.s32.totalorder %s25, 1
        %s934 = scalar_select %p933, %s25, 1
        %s935 = scalar_lea.vmem %s3, %s934
        // Predicated region
        $region57: #{l1_fidelity.1} parent=31 // pred_check
          %p936 = pneg %p141
        $region58: #{l1_fidelity.1} parent=31 // pred_check_branch
          %938 = sbr.rel (%p936) target = $region60
        $region59: #{l1_fidelity.1} parent=31 // pred_region
          _
        $region60: #{l1_fidelity.1} parent=31 // pred_fallthru
          _
      $region32: #{l1_fidelity.1} parent=5 // pred_fallthru
        _
      %p939 = scmp.le.s32.totalorder 2, %s15
      // Predicated region
      $region61: #{l1_fidelity.1} parent=5 // pred_check
        %p940 = pneg %p939
      $region62: #{l1_fidelity.1} parent=5 // pred_check_branch
        %942 = sbr.rel (%p940) target = $region64
      $region63: #{l1_fidelity.1} parent=5 // pred_region
        %s943 = ssub.s32 %s15, 2
        // Predicated region
        $region65: #{l1_fidelity.1} parent=63 // pred_check
          %p944 = pneg %p147
        $region66: #{l1_fidelity.1} parent=63 // pred_check_branch
          %946 = sbr.rel (%p944) target = $region68
        $region67: #{l1_fidelity.1} parent=63 // pred_region
          %p947 = scmp.lt.s32.totalorder %s28, 1
          %s948 = scalar_select %p947, %s28, 1
          %s949 = scalar_lea.vmem %s3, %s948
        $region68: #{l1_fidelity.1} parent=63 // pred_fallthru
          _
      $region64: #{l1_fidelity.1} parent=5 // pred_fallthru
        _
    $region6: #{l1_fidelity.1} parent=1 // loop_footer
      %s19 = sadd.s32 1, %s15
    $region7: #{l1_fidelity.1} parent=1 // loop_footer_branch
      %14 = sbr.rel target = $region3
    $region8: #{l1_fidelity.1} parent=1 // loop_exit
      _
    %950 = vsyncpa [#allocation5], 1
    %s951 = scalar_lea.sflag [#allocation5], 1
    %952 = vsyncpa %s951, 1
    %953 = vsyncpa [#allocation7], 1
    %s954 = scalar_lea.sflag [#allocation7], 1
    %955 = vsyncpa %s954, 1

</llo_original>
